<compile_context>
chip_gen: v7x
topology: tpu7x:2x2x1
jax: 0.10.0
libtpu: 0.0.40
codegen_flags: <defaults>
</compile_context>

<pallas_src>
import functools

import jax
import jax.numpy as jnp
from jax.experimental import pallas as pl
from jax.experimental.pallas import tpu as pltpu

_INV_SQRT2 = 0.7071067811865476  # 1/sqrt(2), folded constant

# Target bytes of *input* per grid step.  Measured tile sweeps only reach
# ~85-90% of HBM roofline once blocks are multi-MiB, so aim for ~6 MiB.
_TARGET_BLOCK_BYTES = 6 * 1024 * 1024


def _ln_gelu_kernel(x_ref, w_ref, b_ref, o_ref, *, eps):
    # x_ref: (tile_rows, hidden) tile in VMEM; compute in fp32.
    x = x_ref[...]
    if x.dtype != jnp.float32:
        x = x.astype(jnp.float32)

    # LayerNorm over the last axis (biased variance, torch semantics).
    # TODO(synk): if the XLU ever binds, the row sum / sum-of-squares could be
    # done on the idle MXU via jnp.dot(x, ones), at a small stability cost.
    mean = jnp.mean(x, axis=-1, keepdims=True)
    xc = x - mean
    var = jnp.mean(xc * xc, axis=-1, keepdims=True)
    inv = jax.lax.rsqrt(var + eps)  # rsqrt lands on the EUP slot

    # Affine (weight/bias are fp32 (1, hidden), broadcast over rows).
    y = xc * inv * w_ref[...] + b_ref[...]

    # Exact GELU: y * (0.5 + 0.5 * erf(y / sqrt(2)))  (torch F.gelu default).
    # TODO(synk): tanh-approx GELU would move the transcendental off the VALU
    # onto the EUP (est. 1.3-2x on v7x once DMA is no longer binding) but
    # deviates ~1e-3 from torch's exact-erf default; kept exact for parity.
    g = y * (0.5 + 0.5 * jax.lax.erf(y * _INV_SQRT2))

    o_ref[...] = g.astype(o_ref.dtype)


def _round_up(x, m):
    return ((x + m - 1) // m) * m


def _vmem_budget_bytes():
    """Scoped-VMEM limit for this call, derived from physical VMEM when possible."""
    try:
        info = pltpu.get_tpu_info()
        vmem_phys = int(info.vmem_capacity_bytes)
    except Exception:
        vmem_phys = 64 * 1024 * 1024  # conservative: v7x physical VMEM
    # ~60% of physical VMEM, never below the 32 MiB default scoped limit.
    return max(32 * 1024 * 1024, int(vmem_phys * 0.6))


def _choose_tile_rows(n_rows, hidden, in_itemsize, out_itemsize, tile_budget_bytes):
    # Sublane alignment: 8 rows for 32-bit dtypes, 16 for 16-bit, 32 for 8-bit.
    align = max(8, 32 // min(in_itemsize, out_itemsize))

    # Per-row VMEM pressure per pipelined step: (input + output tiles) x 2
    # buffers, plus fp32 intermediates (widened x when I/O is sub-32-bit, and
    # y/g style temporaries) so big bf16 tiles don't spill on v7x's 64 MiB.
    fp32_tmp_bytes = 2 * 4
    if min(in_itemsize, out_itemsize) < 4:
        fp32_tmp_bytes += 4
    bytes_per_row = hidden * ((in_itemsize + out_itemsize) * 2 + fp32_tmp_bytes)
    cap = max(align, (tile_budget_bytes // bytes_per_row) // align * align)

    # Byte-based target: ~_TARGET_BLOCK_BYTES of input per block so the
    # ~0.35 us fixed per-step overhead is amortized.
    target_rows = max(
        align, (_TARGET_BLOCK_BYTES // (hidden * in_itemsize)) // align * align
    )
    tile = min(cap, target_rows)

    # Don't over-allocate for small inputs.
    tile = min(tile, _round_up(n_rows, align))

    # Ensure the grid has at least 2 steps when the input allows, so
    # dimension_semantics=("parallel",) can shard rows across both v7x TCs.
    if n_rows >= 2 * align:
        half = _round_up((n_rows + 1) // 2, align)
        tile = min(tile, half)

    return max(align, tile)


def layer_norm_gelu(x, weight, bias, eps=1e-5, tile_rows=None):
    """x: (..., hidden). weight, bias: (hidden,). Returns same shape/dtype as x."""
    orig_shape = x.shape
    hidden = orig_shape[-1]
    x2 = x.reshape(-1, hidden)
    n_rows = x2.shape[0]
    out_dtype = x.dtype

    vmem_budget = _vmem_budget_bytes()
    if tile_rows is None:
        tile_rows = _choose_tile_rows(
            n_rows,
            hidden,
            jnp.dtype(x.dtype).itemsize,
            jnp.dtype(out_dtype).itemsize,
            int(vmem_budget * 0.75),  # headroom for compiler scratch
        )

    # fp32 (1, hidden) params: VMEM-resident across the grid (constant
    # index_map), no in-kernel cast.
    w2 = weight.reshape(1, hidden).astype(jnp.float32)
    b2 = bias.reshape(1, hidden).astype(jnp.float32)

    # Partial last block is clipped by Pallas: overhang rows read garbage but
    # the per-row reduction keeps real rows unaffected and overhang rows are
    # never written back.
    grid = (pl.cdiv(n_rows, tile_rows),)

    out = pl.pallas_call(
        functools.partial(_ln_gelu_kernel, eps=eps),
        out_shape=jax.ShapeDtypeStruct((n_rows, hidden), out_dtype),
        grid_spec=pltpu.PrefetchScalarGridSpec(
            num_scalar_prefetch=0,
            grid=grid,
            in_specs=[
                pl.BlockSpec((tile_rows, hidden), lambda i: (i, 0)),
                pl.BlockSpec((1, hidden), lambda i: (0, 0)),
                pl.BlockSpec((1, hidden), lambda i: (0, 0)),
            ],
            out_specs=pl.BlockSpec((tile_rows, hidden), lambda i: (i, 0)),
        ),
        compiler_params=pltpu.CompilerParams(
            dimension_semantics=("parallel",),  # rows shard across TCs on v7x
            vmem_limit_bytes=vmem_budget,
        ),
    )(x2, w2, b2)

    return out.reshape(orig_shape)


def _reference(x, weight, bias, eps=1e-5):
    xf = x.astype(jnp.float32)
    mean = jnp.mean(xf, axis=-1, keepdims=True)
    var = jnp.mean((xf - mean) ** 2, axis=-1, keepdims=True)
    y = (xf - mean) / jnp.sqrt(var + eps)
    y = y * weight + bias
    return (0.5 * y * (1.0 + jax.lax.erf(y / jnp.sqrt(2.0)))).astype(x.dtype)


if __name__ == "__main__":
    key = jax.random.PRNGKey(0)
    batch, seq, hidden = 2, 8, 128  # num_features = hidden = 128 (lane-dense)

    kx, kw, kb = jax.random.split(key, 3)
    x = jax.random.normal(kx, (batch, seq, hidden), dtype=jnp.float32)
    # deterministic, non-trivial affine params so the affine path is exercised
    weight = 1.0 + 0.1 * jax.random.normal(kw, (hidden,), dtype=jnp.float32)
    bias = 0.1 * jax.random.normal(kb, (hidden,), dtype=jnp.float32)

    out = layer_norm_gelu(x, weight, bias, eps=1e-5)
    out = jax.block_until_ready(out)

    ref = _reference(x, weight, bias, eps=1e-5)
    assert out.shape == x.shape
    assert jnp.allclose(out, ref, atol=2e-5, rtol=1e-5), "mismatch vs reference"

    print("KERNEL_OK")
</pallas_src>

<mosaic_0001>
module attributes {stable_mosaic.version = 11 : i64} {
  func.func @_ln_gelu_kernel(%arg0: i32, %arg1: memref<8x128xf32, #tpu.memory_space<vmem>>, %arg2: memref<1x128xf32, #tpu.memory_space<vmem>>, %arg3: memref<1x128xf32, #tpu.memory_space<vmem>>, %arg4: memref<8x128xf32, #tpu.memory_space<vmem>>) attributes {dimension_semantics = [#tpu.dimension_semantics<parallel>], iteration_bounds = array<i64: 2>, scalar_prefetch = 0 : i64, scratch_operands = 0 : i64, tpu.core_type = #tpu.core_type<tc>, window_params = [{transform_indices = @transform_0, window_bounds = array<i64: 8, 128>}, {pipeline_mode = #tpu.pipeline_mode<synchronous>, transform_indices = @transform_1, window_bounds = array<i64: 1, 128>}, {pipeline_mode = #tpu.pipeline_mode<synchronous>, transform_indices = @transform_2, window_bounds = array<i64: 1, 128>}, {transform_indices = @transform_3, window_bounds = array<i64: 8, 128>}]} {
    %c0 = arith.constant 0 : index
    %c0_0 = arith.constant 0 : index
    %0 = vector.load %arg1[%c0, %c0_0] : memref<8x128xf32, #tpu.memory_space<vmem>>, vector<8x128xf32>
    %cst = arith.constant dense<0.000000e+00> : vector<8xf32>
    %1 = vector.multi_reduction <add>, %0, %cst [1] : vector<8x128xf32> to vector<8xf32>
    %2 = vector.shape_cast %1 : vector<8xf32> to vector<8x1xf32>
    %cst_1 = arith.constant 1.280000e+02 : f32
    %3 = vector.broadcast %cst_1 : f32 to vector<8x1xf32>
    %4 = arith.divf %2, %3 : vector<8x1xf32>
    %5 = vector.broadcast %4 : vector<8x1xf32> to vector<8x128xf32>
    %6 = arith.subf %0, %5 : vector<8x128xf32>
    %7 = arith.mulf %6, %6 : vector<8x128xf32>
    %cst_2 = arith.constant dense<0.000000e+00> : vector<8xf32>
    %8 = vector.multi_reduction <add>, %7, %cst_2 [1] : vector<8x128xf32> to vector<8xf32>
    %9 = vector.shape_cast %8 : vector<8xf32> to vector<8x1xf32>
    %cst_3 = arith.constant 1.280000e+02 : f32
    %10 = vector.broadcast %cst_3 : f32 to vector<8x1xf32>
    %11 = arith.divf %9, %10 : vector<8x1xf32>
    %cst_4 = arith.constant 9.99999974E-6 : f32
    %12 = vector.broadcast %cst_4 : f32 to vector<8x1xf32>
    %13 = arith.addf %11, %12 : vector<8x1xf32>
    %14 = math.rsqrt %13 : vector<8x1xf32>
    %15 = vector.broadcast %14 : vector<8x1xf32> to vector<8x128xf32>
    %16 = arith.mulf %6, %15 : vector<8x128xf32>
    %c0_5 = arith.constant 0 : index
    %c0_6 = arith.constant 0 : index
    %17 = vector.load %arg2[%c0_5, %c0_6] : memref<1x128xf32, #tpu.memory_space<vmem>>, vector<1x128xf32>
    %18 = vector.broadcast %17 : vector<1x128xf32> to vector<8x128xf32>
    %19 = arith.mulf %16, %18 : vector<8x128xf32>
    %c0_7 = arith.constant 0 : index
    %c0_8 = arith.constant 0 : index
    %20 = vector.load %arg3[%c0_7, %c0_8] : memref<1x128xf32, #tpu.memory_space<vmem>>, vector<1x128xf32>
    %21 = vector.broadcast %20 : vector<1x128xf32> to vector<8x128xf32>
    %22 = arith.addf %19, %21 : vector<8x128xf32>
    %cst_9 = arith.constant 0.707106769 : f32
    %23 = vector.broadcast %cst_9 : f32 to vector<8x128xf32>
    %24 = arith.mulf %22, %23 : vector<8x128xf32>
    %25 = math.erf %24 : vector<8x128xf32>
    %cst_10 = arith.constant 5.000000e-01 : f32
    %26 = vector.broadcast %cst_10 : f32 to vector<8x128xf32>
    %27 = arith.mulf %26, %25 : vector<8x128xf32>
    %cst_11 = arith.constant 5.000000e-01 : f32
    %28 = vector.broadcast %cst_11 : f32 to vector<8x128xf32>
    %29 = arith.addf %28, %27 : vector<8x128xf32>
    %30 = arith.mulf %22, %29 : vector<8x128xf32>
    %c0_12 = arith.constant 0 : index
    %c0_13 = arith.constant 0 : index
    %31 = vector.load %arg4[%c0_12, %c0_13] : memref<8x128xf32, #tpu.memory_space<vmem>>, vector<8x128xf32>
    tpu.vector_store %arg4[%c0_12, %c0_13], %30 {strides = array<i32>} : memref<8x128xf32, #tpu.memory_space<vmem>>, vector<8x128xf32>,
    return
  }
  func.func @transform_0(%arg0: i32) -> (i32, i32) {
    %c0_i32 = arith.constant 0 : i32
    %c0_i32_0 = arith.constant 0 : i32
    return %arg0, %c0_i32 : i32, i32
  }
  func.func @transform_1(%arg0: i32) -> (i32, i32) {
    %c0_i32 = arith.constant 0 : i32
    %c0_i32_0 = arith.constant 0 : i32
    %c0_i32_1 = arith.constant 0 : i32
    return %c0_i32, %c0_i32_0 : i32, i32
  }
  func.func @transform_2(%arg0: i32) -> (i32, i32) {
    %c0_i32 = arith.constant 0 : i32
    %c0_i32_0 = arith.constant 0 : i32
    %c0_i32_1 = arith.constant 0 : i32
    return %c0_i32, %c0_i32_0 : i32, i32
  }
  func.func @transform_3(%arg0: i32) -> (i32, i32) {
    %c0_i32 = arith.constant 0 : i32
    %c0_i32_0 = arith.constant 0 : i32
    return %arg0, %c0_i32 : i32, i32
  }
}

</mosaic_0001>

<llo_original>
// kernel: tpu_custom_call.1
$region0: #{tpu_custom_call.1}
  #allocation0 [shape = 'u32[]', space=smem, size = 0x4, offset = 0x4, fixed_abs, tag = 'smem constant byte address 0x4 - core index']
  #allocation1 [shape = 'u32[144,128]{1,0:T(1,128)}', space=vmem, size = 0x12000, scoped, tag = 'internal scratch']
  %s0 = inlined_call_operand.hbm [shape: f32[16,128], index: 0, kind: input, shape index: {}]
  %s1 = inlined_call_operand.vmem [shape: f32[1,128], index: 1, kind: input, shape index: {}]
  %s2 = inlined_call_operand.vmem [shape: f32[1,128], index: 2, kind: input, shape index: {}]
  %s3 = inlined_call_operand.hbm [shape: f32[16,128], index: 3, kind: output, shape index: {}]
  %s4 = sld [smem:[#allocation0]]
  $region49: #{tpu_custom_call.1} parent=0
    _
  %s6 = ssub.s32 1, %s4
  %s7 = scalar_select 0, %s6, %s4
  $region1: #{tpu_custom_call.1} parent=0
    #allocation2 [shape = 'u8[8192]{0}', space=vmem, size = 0x2000, scoped, tag = 'input window, operand 0']
    #allocation3 [shape = 's32[2]{0}', space=sflag, size = 0x8, scoped, tag = 'scoped memory for tpu_custom_call.1']
    #allocation4 [shape = 's32[2]{0}', space=sflag, size = 0x8, scoped, tag = 'scoped memory for tpu_custom_call.1']
    #allocation5 [shape = 'u8[8192]{0}', space=vmem, size = 0x2000, scoped, tag = 'output window, operand 0']
    %8 = vsyncpa [#allocation3], 0
    %s9 = scalar_lea.sflag [#allocation3], 1
    %10 = vsyncpa %s9, 0
    %11 = vsyncpa [#allocation4], 0
    %s12 = scalar_lea.sflag [#allocation4], 1
    %13 = vsyncpa %s12, 0
    loop: start=0, step=1, limit=4
    $region2: #{tpu_custom_call.1} parent=1 // loop_pre_header
      _
    $region3: #{tpu_custom_call.1} parent=1 // loop_header
      %s15 = sphi 0, %s19
      %p16 = scmp.ge.s32.totalorder %s15, 4
      %s25 = sphi 0, %s27
      %s28 = sphi 0, %s25
      %s29 = sphi 0, %s28
      %s45 = sphi 0, %s29
      %s49 = sphi 0, %s49
      %s51 = sphi 0, %s49
      %s52 = sphi 0, %s51
      %s66 = sphi 0, %s52
      %s70 = sphi 0, %s70
      %s72 = sphi 0, %s70
      %s73 = sphi 0, %s72
      %s87 = sphi 0, %s73
      %s93 = sphi 0, %s95
      %s96 = sphi 0, %s93
      %s97 = sphi 0, %s96
      %s113 = sphi 0, %s97
    $region4: #{tpu_custom_call.1} parent=1 // loop_header_branch
      %18 = sbr.rel (%p16) target = $region8
    $region5: #{tpu_custom_call.1} parent=1 // loop_body
      %s20 = ssub.s32 %s15, 1
      %s21 = ssub.s32 %s15, 2
      %s22 = sadd.s32 %s15, 1
      %s23 = ssub.s32 %s15, %s22
      %p24 = scmp.eq.s32.totalorder %s23, 0
      %s26 = sadd.s32 %s25, 1
      %s27 = scalar_select %p24, %s25, %s26
      %p30 = pneg %p24
      %p31 = scmp.eq.s32.totalorder %s15, 1
      %p32 = por %p30, %p31
      %p33 = scmp.ne.s32.totalorder %s25, %s28
      %p34 = scmp.eq.s32.totalorder %s15, 0
      %p35 = por %p33, %p34
      %p36 = scmp.ne.s32.totalorder %s25, %s28
      %p37 = scmp.eq.s32.totalorder %s20, 1
      %p38 = por %p36, %p37
      %p39 = scmp.ne.s32.totalorder %s28, %s29
      %p40 = scmp.eq.s32.totalorder %s20, 0
      %p41 = por %p39, %p40
      %p42 = scmp.ne.s32.totalorder %s28, %s29
      %p43 = scmp.eq.s32.totalorder %s21, 1
      %p44 = por %p42, %p43
      %p46 = scmp.ne.s32.totalorder %s29, %s45
      %p47 = scmp.eq.s32.totalorder %s21, 0
      %p48 = por %p46, %p47
      %s50 = sadd.s32 %s49, 1
      %p53 = scmp.eq.s32.totalorder %s15, 1
      %p54 = scmp.ne.s32.totalorder %s49, %s51
      %p55 = scmp.eq.s32.totalorder %s15, 0
      %p56 = por %p54, %p55
      %p57 = scmp.ne.s32.totalorder %s49, %s51
      %p58 = scmp.eq.s32.totalorder %s20, 1
      %p59 = por %p57, %p58
      %p60 = scmp.ne.s32.totalorder %s51, %s52
      %p61 = scmp.eq.s32.totalorder %s20, 0
      %p62 = por %p60, %p61
      %p63 = scmp.ne.s32.totalorder %s51, %s52
      %p64 = scmp.eq.s32.totalorder %s21, 1
      %p65 = por %p63, %p64
      %p67 = scmp.ne.s32.totalorder %s52, %s66
      %p68 = scmp.eq.s32.totalorder %s21, 0
      %p69 = por %p67, %p68
      %s71 = sadd.s32 %s70, 1
      %p74 = scmp.eq.s32.totalorder %s15, 1
      %p75 = scmp.ne.s32.totalorder %s70, %s72
      %p76 = scmp.eq.s32.totalorder %s15, 0
      %p77 = por %p75, %p76
      %p78 = scmp.ne.s32.totalorder %s70, %s72
      %p79 = scmp.eq.s32.totalorder %s20, 1
      %p80 = por %p78, %p79
      %p81 = scmp.ne.s32.totalorder %s72, %s73
      %p82 = scmp.eq.s32.totalorder %s20, 0
      %p83 = por %p81, %p82
      %p84 = scmp.ne.s32.totalorder %s72, %s73
      %p85 = scmp.eq.s32.totalorder %s21, 1
      %p86 = por %p84, %p85
      %p88 = scmp.ne.s32.totalorder %s73, %s87
      %p89 = scmp.eq.s32.totalorder %s21, 0
      %p90 = por %p88, %p89
      %s91 = ssub.s32 %s15, %s22
      %p92 = scmp.eq.s32.totalorder %s91, 0
      %s94 = sadd.s32 %s93, 1
      %s95 = scalar_select %p92, %s93, %s94
      %p98 = pneg %p92
      %p99 = scmp.eq.s32.totalorder %s15, 1
      %p100 = por %p98, %p99
      %p101 = scmp.ne.s32.totalorder %s93, %s96
      %p102 = scmp.eq.s32.totalorder %s15, 0
      %p103 = por %p101, %p102
      %p104 = scmp.ne.s32.totalorder %s93, %s96
      %p105 = scmp.eq.s32.totalorder %s20, 1
      %p106 = por %p104, %p105
      %p107 = scmp.ne.s32.totalorder %s96, %s97
      %p108 = scmp.eq.s32.totalorder %s20, 0
      %p109 = por %p107, %p108
      %p110 = scmp.ne.s32.totalorder %s96, %s97
      %p111 = scmp.eq.s32.totalorder %s21, 1
      %p112 = por %p110, %p111
      %p114 = scmp.ne.s32.totalorder %s97, %s113
      %p115 = scmp.eq.s32.totalorder %s21, 0
      %p116 = por %p114, %p115
      %p117 = scmp.le.s32.totalorder 1, %s15
      %p118 = scmp.lt.s32.totalorder %s15, 3
      %p119 = pnand %p117, %p118
      %p120 = pneg %p119
      // Predicated region
      $region9: #{tpu_custom_call.1} parent=5 // pred_check
        _
      $region10: #{tpu_custom_call.1} parent=5 // pred_check_branch
        %122 = sbr.rel (%p119) target = $region12
      $region11: #{tpu_custom_call.1} parent=5 // pred_region
        %s123 = ssub.s32 %s15, 1
        // Predicated region
        $region13: #{tpu_custom_call.1} parent=11 // pred_check
          %p124 = pneg %p62
        $region14: #{tpu_custom_call.1} parent=11 // pred_check_branch
          %126 = sbr.rel (%p124) target = $region16
        $region15: #{tpu_custom_call.1} parent=11 // pred_region
          _
        $region16: #{tpu_custom_call.1} parent=11 // pred_fallthru
          _
        // Predicated region
        $region17: #{tpu_custom_call.1} parent=11 // pred_check
          %p127 = pneg %p83
        $region18: #{tpu_custom_call.1} parent=11 // pred_check_branch
          %129 = sbr.rel (%p127) target = $region20
        $region19: #{tpu_custom_call.1} parent=11 // pred_region
          _
        $region20: #{tpu_custom_call.1} parent=11 // pred_fallthru
          _
      $region12: #{tpu_custom_call.1} parent=5 // pred_fallthru
        _
      %p130 = scmp.lt.s32.totalorder %s15, 2
      // Predicated region
      $region21: #{tpu_custom_call.1} parent=5 // pred_check
        %p131 = pneg %p130
      $region22: #{tpu_custom_call.1} parent=5 // pred_check_branch
        %133 = sbr.rel (%p131) target = $region24
      $region23: #{tpu_custom_call.1} parent=5 // pred_region
        // Predicated region
        $region25: #{tpu_custom_call.1} parent=23 // pred_check
          %p134 = pneg %p35
        $region26: #{tpu_custom_call.1} parent=23 // pred_check_branch
          %136 = sbr.rel (%p134) target = $region28
        $region27: #{tpu_custom_call.1} parent=23 // pred_region
          %s137 = sand.u32 %s25, 1
          %s138 = scalar_lea.sflag [#allocation3], %s137
          %s139 = sand.u32 %s25, 1
          %s140 = smul.addr %s139, 8
          %s141 = scalar_lea.vmem [#allocation2], %s140
          %s143 = ssub.s32 128, 128
          %144 = vsyncadd %s138, %s143
          %s145 = smul.addr %s15, 128
          %s146 = scalar_lea.hbm %s0, %s145
          %s148 = sshll.u32 %s141, 4
          %s149 = int_to_ptr.vmem [resolvable:$true] %s148
          %151 = dma.hbm_to_vmem [thread:$0]  %s146, 128, %s149, %s138
        $region28: #{tpu_custom_call.1} parent=23 // pred_fallthru
          _
      $region24: #{tpu_custom_call.1} parent=5 // pred_fallthru
        _
      %p152 = scmp.le.s32.totalorder 1, %s15
      %p153 = scmp.lt.s32.totalorder %s15, 3
      %p154 = pnand %p152, %p153
      %p155 = pneg %p154
      // Predicated region
      $region29: #{tpu_custom_call.1} parent=5 // pred_check
        _
      $region30: #{tpu_custom_call.1} parent=5 // pred_check_branch
        %157 = sbr.rel (%p154) target = $region32
      $region31: #{tpu_custom_call.1} parent=5 // pred_region
        %s158 = ssub.s32 %s15, 1
        %s159 = sand.u32 %s28, 1
        %s160 = scalar_lea.sflag [#allocation3], %s159
        %s161 = sand.u32 %s28, 1
        %s162 = smul.addr %s161, 8
        %s163 = scalar_lea.vmem [#allocation2], %s162
        // Predicated region
        $region33: #{tpu_custom_call.1} parent=31 // pred_check
          %p164 = pneg %p41
        $region34: #{tpu_custom_call.1} parent=31 // pred_check_branch
          %166 = sbr.rel (%p164) target = $region36
        $region35: #{tpu_custom_call.1} parent=31 // pred_region
          %167 = dma.done %s160, 128
        $region36: #{tpu_custom_call.1} parent=31 // pred_fallthru
          _
        %s168 = sand.u32 %s28, 1
        %s169 = scalar_lea.sflag [#allocation3], %s168
        %s170 = sand.u32 %s28, 1
        %s171 = smul.addr %s170, 8
        %s172 = scalar_lea.vmem [#allocation2], %s171
        %p173 = pneg %p41
        %p174 = pneg %p38
        %p175 = pneg %p62
        %p176 = pneg %p59
        %p177 = pneg %p83
        %p178 = pneg %p80
        %p179 = pneg %p109
        %p180 = pneg %p106
        %s181 = sand.u32 %s96, 1
        %s182 = scalar_lea.sflag [#allocation4], %s181
        %s183 = sand.u32 %s96, 1
        %s184 = smul.addr %s183, 8
        %s185 = scalar_lea.vmem [#allocation5], %s184
        %v186 = vld [vmem:[%s163] sm:$0xff]
        %187 = vadd.xlane.f32.xlu0 %v186
        %v188 = vpop.xlane.xlu0 %187
        %v189 = vrcp.pop 128.0
        %v190 = vmul.f32 %v188, %v189
        %v191 = vsub.f32 %v186, %v190
        %v192 = vmul.f32 %v191, %v191
        %193 = vadd.xlane.f32.xlu0 %v192
        %v194 = vpop.xlane.xlu0 %193
        %v195 = vmul.f32 %v194, %v189
        %v196 = vadd.f32 %v195, 1e-05
        %v197 = vrsqrt.pop %v196
        %v198 = vmul.f32 %v191, %v197
        %v199 = vld [vmem:[%s1] sm:$0x1]
        %v201 = vlaneseq
        %v202 = vshrl.u32 %v201, 7
        %v203 = vsub.s32 0, %v202
        %v204 = vrot.slane %v199, %v203
        %v206 = vmul.f32 %v198, %v204
        %v207 = vld [vmem:[%s2] sm:$0x1]
        %v209 = vlaneseq
        %v210 = vshrl.u32 %v209, 7
        %v211 = vsub.s32 0, %v210
        %v212 = vrot.slane %v207, %v211
        %v214 = vadd.f32 %v206, %v212
        %v215 = vmul.f32 %v214, 0.70710677
        %v216 = verf.f32.pop %v215
        %v217 = vmul.f32 %v216, 0.5
        %v218 = vadd.f32 %v217, 0.5
        %v219 = vmul.f32 %v214, %v218
        %220 = vst [vmem:[%s185] sm:$0xff] %v219
        %s221 = sand.u32 %s96, 1
        %s222 = scalar_lea.sflag [#allocation4], %s221
        %s223 = sand.u32 %s96, 1
        %s224 = smul.addr %s223, 8
        %s225 = scalar_lea.vmem [#allocation5], %s224
        // Predicated region
        $region37: #{tpu_custom_call.1} parent=31 // pred_check
          %p226 = pneg %p106
        $region38: #{tpu_custom_call.1} parent=31 // pred_check_branch
          %228 = sbr.rel (%p226) target = $region40
        $region39: #{tpu_custom_call.1} parent=31 // pred_region
          %s230 = ssub.s32 128, 128
          %231 = vsyncadd %s222, %s230
          %s232 = smul.addr %s20, 128
          %s233 = scalar_lea.hbm %s3, %s232
          %s235 = sshll.u32 %s225, 4
          %s236 = int_to_ptr.vmem [resolvable:$true] %s235
          %238 = dma.vmem_to_hbm [thread:$0]  %s236, 128, %s233, %s222
        $region40: #{tpu_custom_call.1} parent=31 // pred_fallthru
          _
      $region32: #{tpu_custom_call.1} parent=5 // pred_fallthru
        _
      %p239 = scmp.le.s32.totalorder 2, %s15
      // Predicated region
      $region41: #{tpu_custom_call.1} parent=5 // pred_check
        %p240 = pneg %p239
      $region42: #{tpu_custom_call.1} parent=5 // pred_check_branch
        %242 = sbr.rel (%p240) target = $region44
      $region43: #{tpu_custom_call.1} parent=5 // pred_region
        %s243 = ssub.s32 %s15, 2
        // Predicated region
        $region45: #{tpu_custom_call.1} parent=43 // pred_check
          %p244 = pneg %p112
        $region46: #{tpu_custom_call.1} parent=43 // pred_check_branch
          %246 = sbr.rel (%p244) target = $region48
        $region47: #{tpu_custom_call.1} parent=43 // pred_region
          %s247 = sand.u32 %s97, 1
          %s248 = scalar_lea.sflag [#allocation4], %s247
          %s249 = sand.u32 %s97, 1
          %s250 = smul.addr %s249, 8
          %s251 = scalar_lea.vmem [#allocation5], %s250
          %252 = dma.done %s248, 128
        $region48: #{tpu_custom_call.1} parent=43 // pred_fallthru
          _
      $region44: #{tpu_custom_call.1} parent=5 // pred_fallthru
        _
    $region6: #{tpu_custom_call.1} parent=1 // loop_footer
      %s19 = sadd.s32 1, %s15
    $region7: #{tpu_custom_call.1} parent=1 // loop_footer_branch
      %14 = sbr.rel target = $region3
    $region8: #{tpu_custom_call.1} parent=1 // loop_exit
      _
    %253 = vsyncpa [#allocation3], 1
    %s254 = scalar_lea.sflag [#allocation3], 1
    %255 = vsyncpa %s254, 1
    %256 = vsyncpa [#allocation4], 1
    %s257 = scalar_lea.sflag [#allocation4], 1
    %258 = vsyncpa %s257, 1

</llo_original>
